<compile_context>
chip_gen: v7x
topology: tpu7x:2x2x1
jax: 0.10.0
libtpu: 0.0.40
codegen_flags: <defaults>
</compile_context>

<pallas_src>
import functools

import jax
import jax.numpy as jnp
from jax.experimental import pallas as pl
from jax.experimental.pallas import tpu as pltpu


# --------------------------------------------------------------------------- #
# Helpers
# --------------------------------------------------------------------------- #
def _divisors(n):
    ds = set()
    i = 1
    while i * i <= n:
        if n % i == 0:
            ds.add(i)
            ds.add(n // i)
        i += 1
    return sorted(ds)


def _largest_divisor_leq(n, cap):
    cap = max(1, min(n, cap))
    best = 1
    for d in _divisors(n):
        if d <= cap:
            best = d
    return best


def _tpu_vmem_capacity_bytes():
    """Physical VMEM per core; conservative fallback if the query is unavailable."""
    try:
        info = pltpu.get_tpu_info()
        for attr in ("vmem_capacity_bytes", "vmem_bytes", "vmem_size_bytes"):
            v = getattr(info, attr, None)
            if v:
                return int(v)
    except Exception:
        pass
    return 64 << 20  # v7x per-TensorCore VMEM (smallest of the target gens)


def _vmem_limit(vmem_cap, resident_bytes):
    """Scoped-VMEM limit: enough for our resident buffers + compiler headroom."""
    return int(min(vmem_cap // 2, max(resident_bytes + (8 << 20), 24 << 20)))


# --------------------------------------------------------------------------- #
# Kernels
# --------------------------------------------------------------------------- #
def _fused_kernel(x_ref, o_ref, *, cg, inv_cg):
    # x_ref: (Bt, C, tl)  -- all 3 groups in one slab
    # o_ref: (Bt, 3, tl)  -- per-group channel mean
    x = x_ref[...].astype(jnp.float32)
    parts = [
        jnp.sum(x[:, g * cg:(g + 1) * cg, :], axis=1, keepdims=True)
        for g in range(3)
    ]
    o_ref[...] = (jnp.concatenate(parts, axis=1) * inv_cg).astype(o_ref.dtype)


def _group_acc_kernel(x_ref, o_ref, acc_ref, *, inv_cg):
    # x_ref:   (1, tc, tl)  -- contiguous channel chunk of one (batch, group) slab
    # o_ref:   (1, 1,  tl)
    # acc_ref: (1, 1,  tl)  -- f32 VMEM accumulator across the channel grid axis
    k = pl.program_id(2)

    @pl.when(k == 0)
    def _():
        acc_ref[...] = jnp.zeros_like(acc_ref)

    acc_ref[...] += jnp.sum(x_ref[...].astype(jnp.float32), axis=1, keepdims=True)

    @pl.when(k == pl.num_programs(2) - 1)
    def _():
        o_ref[...] = (acc_ref[...] * inv_cg).astype(o_ref.dtype)


# --------------------------------------------------------------------------- #
# Wrapper
# --------------------------------------------------------------------------- #
def bagging_average(y):
    """y: (N, C, H, W) with C % 3 == 0  ->  (N, 3, H, W)."""
    N, C, H, W = y.shape
    # TODO(synk): torch.chunk yields ragged chunks when C % 3 != 0; only the
    # equal-chunk bagging configuration is supported here.
    assert C % 3 == 0, "Bagging_average kernel requires channels divisible by 3"
    cg = C // 3
    hw = H * W
    itemsize = jnp.dtype(y.dtype).itemsize

    vmem_cap = _tpu_vmem_capacity_bytes()
    budget = min(vmem_cap // 3, 24 << 20)  # total resident double-buffered budget

    cost = pl.CostEstimate(
        flops=N * (C + 3) * hw,
        transcendentals=0,
        bytes_accessed=(N * C + N * 3) * hw * itemsize,
    )

    # ---------- Path A: fused whole-C slab fits in VMEM (common case) --------
    full_resident = 2 * (C + 3) * hw * itemsize  # double-buffered in + out, Bt=1
    if full_resident <= budget:
        tl = hw
        # Keep >= 2 parallel blocks (v7x has 2 TensorCores).  If the batch axis
        # is degenerate, split the lane axis in half when it stays 128-aligned.
        if N == 1 and hw % 256 == 0:
            tl = hw // 2
        lane_blocks = hw // tl

        per_row = 2 * (C + 3) * tl * itemsize
        bt_cap = max(1, budget // per_row)
        if lane_blocks < 2 and N >= 2:
            bt_cap = min(bt_cap, N // 2)
        bt = _largest_divisor_leq(N, bt_cap)
        resident = per_row * bt

        x = y.reshape(N, C, hw)
        out = pl.pallas_call(
            functools.partial(_fused_kernel, cg=cg, inv_cg=1.0 / cg),
            out_shape=jax.ShapeDtypeStruct((N, 3, hw), y.dtype),
            grid_spec=pltpu.PrefetchScalarGridSpec(
                num_scalar_prefetch=0,
                grid=(N // bt, hw // tl),
                in_specs=[pl.BlockSpec((bt, C, tl), lambda b, l: (b, 0, l))],
                out_specs=pl.BlockSpec((bt, 3, tl), lambda b, l: (b, 0, l)),
            ),
            compiler_params=pltpu.CompilerParams(
                dimension_semantics=("parallel", "parallel"),
                vmem_limit_bytes=_vmem_limit(vmem_cap, resident),
            ),
            cost_estimate=cost,
        )(x)
        return out.reshape(N, 3, H, W)

    # ---------- Path B: big slab -> channel-split + VMEM accumulator ---------
    # Tiles must respect the (8, 128) rule: channel tile is a multiple of 8 or
    # the full group; lane tile is a multiple of 128 or the full spatial extent.
    def resident_b(tc, tl):
        return 2 * tc * tl * itemsize + 2 * tl * itemsize + 4 * tl  # in + out + acc

    lane_tiles = sorted({d for d in _divisors(hw) if d % 128 == 0} | {hw})
    chan_tiles = sorted({d for d in _divisors(cg) if d % 8 == 0} | {cg})

    tl_sel, tc_sel = None, None
    for tl in sorted(lane_tiles, reverse=True):        # prefer contiguous lanes
        fitting = [tc for tc in chan_tiles if resident_b(tc, tl) <= budget]
        if fitting:
            tl_sel, tc_sel = tl, max(fitting)
            break
    if tl_sel is None:  # pathological shapes: smallest legal tiles
        tl_sel, tc_sel = min(lane_tiles), min(chan_tiles)

    resident = resident_b(tc_sel, tl_sel)
    x = y.reshape(N * 3, cg, hw)
    out = pl.pallas_call(
        functools.partial(_group_acc_kernel, inv_cg=1.0 / cg),
        out_shape=jax.ShapeDtypeStruct((N * 3, 1, hw), y.dtype),
        grid_spec=pltpu.PrefetchScalarGridSpec(
            num_scalar_prefetch=0,
            grid=(N * 3, hw // tl_sel, cg // tc_sel),
            in_specs=[pl.BlockSpec((1, tc_sel, tl_sel), lambda b, l, k: (b, k, l))],
            out_specs=pl.BlockSpec((1, 1, tl_sel), lambda b, l, k: (b, 0, l)),
            scratch_shapes=[pltpu.VMEM((1, 1, tl_sel), jnp.float32)],
        ),
        compiler_params=pltpu.CompilerParams(
            dimension_semantics=("parallel", "parallel", "arbitrary"),
            vmem_limit_bytes=_vmem_limit(vmem_cap, resident),
        ),
        cost_estimate=cost,
    )(x)
    return out.reshape(N, 3, H, W)


# --------------------------------------------------------------------------- #
# Pure-JAX reference
# --------------------------------------------------------------------------- #
def bagging_average_reference(y):
    cg = y.shape[1] // 3
    groups = [y[:, g * cg:(g + 1) * cg] for g in range(3)]
    return jnp.concatenate(
        [jnp.mean(g, axis=1, keepdims=True) for g in groups], axis=1)


if __name__ == "__main__":
    # Small shapes consistent with the module: batch=2, 12 channels
    # (3 groups of 4 "bagged" predictions), 16x16 spatial.
    N, C, H, W = 2, 12, 16, 16
    key = jax.random.PRNGKey(0)
    y = jax.random.normal(key, (N, C, H, W), jnp.float32)

    out = bagging_average(y)
    jax.block_until_ready(out)

    ref = bagging_average_reference(y)
    assert out.shape == (N, 3, H, W)
    assert jnp.allclose(out, ref, atol=1e-5, rtol=1e-5), "Pallas output != reference"
    print("KERNEL_OK")
</pallas_src>

<mosaic_0001>
module attributes {stable_mosaic.version = 11 : i64} {
  func.func @_fused_kernel(%arg0: i32, %arg1: i32, %arg2: memref<1x12x256xf32, #tpu.memory_space<vmem>>, %arg3: memref<1x3x256xf32, #tpu.memory_space<vmem>>) attributes {dimension_semantics = [#tpu.dimension_semantics<parallel>, #tpu.dimension_semantics<parallel>], iteration_bounds = array<i64: 2, 1>, scalar_prefetch = 0 : i64, scratch_operands = 0 : i64, tpu.core_type = #tpu.core_type<tc>, window_params = [{transform_indices = @transform_0, window_bounds = array<i64: 1, 12, 256>}, {transform_indices = @transform_1, window_bounds = array<i64: 1, 3, 256>}]} {
    %c0 = arith.constant 0 : index
    %c0_0 = arith.constant 0 : index
    %c0_1 = arith.constant 0 : index
    %0 = vector.load %arg2[%c0, %c0_0, %c0_1] : memref<1x12x256xf32, #tpu.memory_space<vmem>>, vector<1x12x256xf32>
    %1 = vector.extract_strided_slice %0 {offsets = [0, 0, 0], sizes = [1, 4, 256], strides = [1, 1, 1]} : vector<1x12x256xf32> to vector<1x4x256xf32>
    %cst = arith.constant dense<0.000000e+00> : vector<1x256xf32>
    %2 = vector.multi_reduction <add>, %1, %cst [1] : vector<1x4x256xf32> to vector<1x256xf32>
    %3 = vector.shape_cast %2 : vector<1x256xf32> to vector<1x1x256xf32>
    %4 = vector.extract_strided_slice %0 {offsets = [0, 4, 0], sizes = [1, 4, 256], strides = [1, 1, 1]} : vector<1x12x256xf32> to vector<1x4x256xf32>
    %cst_2 = arith.constant dense<0.000000e+00> : vector<1x256xf32>
    %5 = vector.multi_reduction <add>, %4, %cst_2 [1] : vector<1x4x256xf32> to vector<1x256xf32>
    %6 = vector.shape_cast %5 : vector<1x256xf32> to vector<1x1x256xf32>
    %7 = vector.extract_strided_slice %0 {offsets = [0, 8, 0], sizes = [1, 4, 256], strides = [1, 1, 1]} : vector<1x12x256xf32> to vector<1x4x256xf32>
    %cst_3 = arith.constant dense<0.000000e+00> : vector<1x256xf32>
    %8 = vector.multi_reduction <add>, %7, %cst_3 [1] : vector<1x4x256xf32> to vector<1x256xf32>
    %9 = vector.shape_cast %8 : vector<1x256xf32> to vector<1x1x256xf32>
    %10 = tpu.concatenate %3, %6, %9 in 1 : vector<1x1x256xf32>, vector<1x1x256xf32>, vector<1x1x256xf32> -> vector<1x3x256xf32>
    %cst_4 = arith.constant 2.500000e-01 : f32
    %11 = vector.broadcast %cst_4 : f32 to vector<1x3x256xf32>
    %12 = arith.mulf %10, %11 : vector<1x3x256xf32>
    %c0_5 = arith.constant 0 : index
    %c0_6 = arith.constant 0 : index
    %c0_7 = arith.constant 0 : index
    %13 = vector.load %arg3[%c0_5, %c0_6, %c0_7] : memref<1x3x256xf32, #tpu.memory_space<vmem>>, vector<1x3x256xf32>
    tpu.vector_store %arg3[%c0_5, %c0_6, %c0_7], %12 {strides = array<i32>} : memref<1x3x256xf32, #tpu.memory_space<vmem>>, vector<1x3x256xf32>,
    return
  }
  func.func @transform_0(%arg0: i32, %arg1: i32) -> (i32, i32, i32) {
    %c0_i32 = arith.constant 0 : i32
    %c0_i32_0 = arith.constant 0 : i32
    return %arg0, %c0_i32, %arg1 : i32, i32, i32
  }
  func.func @transform_1(%arg0: i32, %arg1: i32) -> (i32, i32, i32) {
    %c0_i32 = arith.constant 0 : i32
    %c0_i32_0 = arith.constant 0 : i32
    return %arg0, %c0_i32, %arg1 : i32, i32, i32
  }
}

</mosaic_0001>

<llo_original>
// kernel: tpu_custom_call.1
$region0: #{tpu_custom_call.1}
  #allocation0 [shape = 'u32[]', space=smem, size = 0x4, offset = 0x4, fixed_abs, tag = 'smem constant byte address 0x4 - core index']
  #allocation1 [shape = 'u32[144,128]{1,0:T(1,128)}', space=vmem, size = 0x12000, scoped, tag = 'internal scratch']
  %s0 = inlined_call_operand.vmem [shape: f32[2,12,256], index: 0, kind: input, shape index: {}]
  %s1 = inlined_call_operand.vmem [shape: f32[2,3,256], index: 1, kind: output, shape index: {}]
  %s2 = sld [smem:[#allocation0]]
  $region37: #{tpu_custom_call.1} parent=0
    _
  %s4 = ssub.s32 1, %s2
  %s5 = scalar_select 0, %s4, %s2
  loop: start=0, step=1, limit=4
  $region2: #{tpu_custom_call.1} parent=0 // loop_pre_header
    _
  $region3: #{tpu_custom_call.1} parent=0 // loop_header
    %s7 = sphi 0, %s11
    %p8 = scmp.ge.s32.totalorder %s7, 4
    %s14 = sphi 0, %s26
    %s15 = sphi 0, %s22
    %s16 = sphi 0, %s14
    %s17 = sphi 0, %s15
    %s18 = sphi 0, %s16
    %s19 = sphi 0, %s17
    %s31 = sphi 0, %s33
    %s34 = sphi 0, %s31
    %s35 = sphi 0, %s34
    %s51 = sphi 0, %s35
    %s59 = sphi 0, %s61
    %s62 = sphi 0, %s59
    %s63 = sphi 0, %s62
    %s79 = sphi 0, %s63
  $region4: #{tpu_custom_call.1} parent=0 // loop_header_branch
    %10 = sbr.rel (%p8) target = $region8
  $region5: #{tpu_custom_call.1} parent=0 // loop_body
    %s12 = ssub.s32 %s7, 1
    %s13 = ssub.s32 %s7, 2
    %s20 = sadd.s32 1, %s15
    %p21 = scmp.ge.s32.totalorder %s20, 1
    %s22 = scalar_select %p21, 0, %s20
    %s23 = sadd.s32 1, %s14
    %s24 = scalar_select %p21, %s23, %s14
    %p25 = scmp.ge.s32.totalorder %s24, 2
    %s26 = scalar_select %p25, 0, %s24
    %s27 = ssub.s32 %s14, %s26
    %s28 = ssub.s32 %s15, %s22
    %s29 = sor.u32 %s27, %s28
    %p30 = scmp.eq.s32.totalorder %s29, 0
    %s32 = sadd.s32 %s31, 1
    %s33 = scalar_select %p30, %s31, %s32
    %p36 = pneg %p30
    %p37 = scmp.eq.s32.totalorder %s7, 1
    %p38 = por %p36, %p37
    %p39 = scmp.ne.s32.totalorder %s31, %s34
    %p40 = scmp.eq.s32.totalorder %s7, 0
    %p41 = por %p39, %p40
    %p42 = scmp.ne.s32.totalorder %s31, %s34
    %p43 = scmp.eq.s32.totalorder %s12, 1
    %p44 = por %p42, %p43
    %p45 = scmp.ne.s32.totalorder %s34, %s35
    %p46 = scmp.eq.s32.totalorder %s12, 0
    %p47 = por %p45, %p46
    %p48 = scmp.ne.s32.totalorder %s34, %s35
    %p49 = scmp.eq.s32.totalorder %s13, 1
    %p50 = por %p48, %p49
    %p52 = scmp.ne.s32.totalorder %s35, %s51
    %p53 = scmp.eq.s32.totalorder %s13, 0
    %p54 = por %p52, %p53
    %s55 = ssub.s32 %s14, %s26
    %s56 = ssub.s32 %s15, %s22
    %s57 = sor.u32 %s55, %s56
    %p58 = scmp.eq.s32.totalorder %s57, 0
    %s60 = sadd.s32 %s59, 1
    %s61 = scalar_select %p58, %s59, %s60
    %p64 = pneg %p58
    %p65 = scmp.eq.s32.totalorder %s7, 1
    %p66 = por %p64, %p65
    %p67 = scmp.ne.s32.totalorder %s59, %s62
    %p68 = scmp.eq.s32.totalorder %s7, 0
    %p69 = por %p67, %p68
    %p70 = scmp.ne.s32.totalorder %s59, %s62
    %p71 = scmp.eq.s32.totalorder %s12, 1
    %p72 = por %p70, %p71
    %p73 = scmp.ne.s32.totalorder %s62, %s63
    %p74 = scmp.eq.s32.totalorder %s12, 0
    %p75 = por %p73, %p74
    %p76 = scmp.ne.s32.totalorder %s62, %s63
    %p77 = scmp.eq.s32.totalorder %s13, 1
    %p78 = por %p76, %p77
    %p80 = scmp.ne.s32.totalorder %s63, %s79
    %p81 = scmp.eq.s32.totalorder %s13, 0
    %p82 = por %p80, %p81
    %p83 = scmp.le.s32.totalorder 1, %s7
    %p84 = scmp.lt.s32.totalorder %s7, 3
    %p85 = pnand %p83, %p84
    %p86 = pneg %p85
    // Predicated region
    $region9: #{tpu_custom_call.1} parent=5 // pred_check
      _
    $region10: #{tpu_custom_call.1} parent=5 // pred_check_branch
      %88 = sbr.rel (%p85) target = $region12
    $region11: #{tpu_custom_call.1} parent=5 // pred_region
      %s89 = ssub.s32 %s7, 1
    $region12: #{tpu_custom_call.1} parent=5 // pred_fallthru
      _
    %p90 = scmp.lt.s32.totalorder %s7, 2
    // Predicated region
    $region13: #{tpu_custom_call.1} parent=5 // pred_check
      %p91 = pneg %p90
    $region14: #{tpu_custom_call.1} parent=5 // pred_check_branch
      %93 = sbr.rel (%p91) target = $region16
    $region15: #{tpu_custom_call.1} parent=5 // pred_region
      // Predicated region
      $region17: #{tpu_custom_call.1} parent=15 // pred_check
        %p94 = pneg %p41
      $region18: #{tpu_custom_call.1} parent=15 // pred_check_branch
        %96 = sbr.rel (%p94) target = $region20
      $region19: #{tpu_custom_call.1} parent=15 // pred_region
        %s97 = smul.u32 2, %s15
        %p98 = scmp.lt.s32.totalorder %s14, 1
        %s99 = scalar_select %p98, %s14, 1
        %p100 = scmp.lt.s32.totalorder %s97, 1
        %s101 = scalar_select %p100, %s97, 1
        %s102 = smul.addr %s99, 4
        %s103 = sadd.s32 %s101, %s102
        %s104 = smul.addr %s103, 8
        %s105 = scalar_lea.vmem %s0, %s104
        %s106 = smul.u32 2, %s15
      $region20: #{tpu_custom_call.1} parent=15 // pred_fallthru
        _
    $region16: #{tpu_custom_call.1} parent=5 // pred_fallthru
      _
    %p107 = scmp.le.s32.totalorder 1, %s7
    %p108 = scmp.lt.s32.totalorder %s7, 3
    %p109 = pnand %p107, %p108
    %p110 = pneg %p109
    // Predicated region
    $region21: #{tpu_custom_call.1} parent=5 // pred_check
      _
    $region22: #{tpu_custom_call.1} parent=5 // pred_check_branch
      %112 = sbr.rel (%p109) target = $region24
    $region23: #{tpu_custom_call.1} parent=5 // pred_region
      %s113 = ssub.s32 %s7, 1
      %s114 = smul.u32 2, %s17
      %p115 = scmp.lt.s32.totalorder %s16, 1
      %s116 = scalar_select %p115, %s16, 1
      %p117 = scmp.lt.s32.totalorder %s114, 1
      %s118 = scalar_select %p117, %s114, 1
      %s119 = smul.addr %s116, 4
      %s120 = sadd.s32 %s118, %s119
      %s121 = smul.addr %s120, 8
      %s122 = scalar_lea.vmem %s0, %s121
      %p123 = pneg %p47
      %p124 = pneg %p44
      %p125 = pneg %p75
      %p126 = pneg %p72
      %s127 = smul.u32 2, %s17
      %p128 = scmp.lt.s32.totalorder %s16, 1
      %s129 = scalar_select %p128, %s16, 1
      %p130 = scmp.lt.s32.totalorder %s127, 1
      %s131 = scalar_select %p130, %s127, 1
      %s132 = smul.addr %s129, 2
      %s133 = sadd.s32 %s131, %s132
      %s134 = smul.addr %s133, 4
      %s135 = scalar_lea.vmem %s1, %s134
      %s136 = smul.u32 2, %s17
      %p137 = scmp.lt.s32.totalorder %s16, 1
      %s138 = scalar_select %p137, %s16, 1
      %p139 = scmp.lt.s32.totalorder %s136, 1
      %s140 = scalar_select %p139, %s136, 1
      %s141 = smul.addr %s138, 4
      %s142 = sadd.s32 %s140, %s141
      %s143 = smul.addr %s142, 8
      %s144 = scalar_lea.vmem %s0, %s143
      %s145 = smul.u32 2, %s17
      %s146 = smul.u32 2, %s17
      %p147 = scmp.lt.s32.totalorder %s16, 1
      %s148 = scalar_select %p147, %s16, 1
      %p149 = scmp.lt.s32.totalorder %s146, 1
      %s150 = scalar_select %p149, %s146, 1
      %s151 = smul.addr %s148, 2
      %s152 = sadd.s32 %s150, %s151
      %s153 = smul.addr %s152, 4
      %s154 = scalar_lea.vmem %s1, %s153
      %s155 = smul.u32 2, %s17
      %v156 = vld [vmem:[%s144] sm:$0xff]
      %v157 = vld [vmem:[%s144 + $0x8] sm:$0xff]
      %v158 = vld [vmem:[%s144 + $0x10] sm:$0xf]
      %v159 = vld [vmem:[%s144 + $0x18] sm:$0xf]
      %vm160 = vcmask 1043456
      %v161 = vsel %vm160, %v156, 0.0
      %v162 = vrot.slane %v161, 4
      %v163 = vadd.f32 %v161, %v162
      %v164 = vrot.slane %v163, 2
      %v165 = vadd.f32 %v163, %v164
      %v166 = vrot.slane %v165, 1
      %v167 = vadd.f32 %v165, %v166
      %v168 = vsel %vm160, %v157, 0.0
      %v169 = vrot.slane %v168, 4
      %v170 = vadd.f32 %v168, %v169
      %v171 = vrot.slane %v170, 2
      %v172 = vadd.f32 %v170, %v171
      %v173 = vrot.slane %v172, 1
      %v174 = vadd.f32 %v172, %v173
      %v177 = vrot.slane %v156, 4
      %v178 = vrot.slane %v157, 4
      %v181 = vsel %vm160, %v177, 0.0
      %v182 = vrot.slane %v181, 4
      %v183 = vadd.f32 %v181, %v182
      %v184 = vrot.slane %v183, 2
      %v185 = vadd.f32 %v183, %v184
      %v186 = vrot.slane %v185, 1
      %v187 = vadd.f32 %v185, %v186
      %v188 = vsel %vm160, %v178, 0.0
      %v189 = vrot.slane %v188, 4
      %v190 = vadd.f32 %v188, %v189
      %v191 = vrot.slane %v190, 2
      %v192 = vadd.f32 %v190, %v191
      %v193 = vrot.slane %v192, 1
      %v194 = vadd.f32 %v192, %v193
      %v195 = vsel %vm160, %v158, 0.0
      %v196 = vrot.slane %v195, 4
      %v197 = vadd.f32 %v195, %v196
      %v198 = vrot.slane %v197, 2
      %v199 = vadd.f32 %v197, %v198
      %v200 = vrot.slane %v199, 1
      %v201 = vadd.f32 %v199, %v200
      %v202 = vsel %vm160, %v159, 0.0
      %v203 = vrot.slane %v202, 4
      %v204 = vadd.f32 %v202, %v203
      %v205 = vrot.slane %v204, 2
      %v206 = vadd.f32 %v204, %v205
      %v207 = vrot.slane %v206, 1
      %v208 = vadd.f32 %v206, %v207
      %vm209 = vcmask 1040384
      %v210 = vsel %vm209, %v167, %v187
      %v211 = vsel %vm209, %v174, %v194
      %vm212 = vcmask 1041408
      %v213 = vsel %vm212, %v210, %v201
      %v214 = vsel %vm212, %v211, %v208
      %v215 = vmul.f32 %v213, 0.25
      %v216 = vmul.f32 %v214, 0.25
      %v219 = vcombine.low %v215, %v216
      %221 = vst [vmem:[%s154] sm:$0x77] %v219
      %s222 = smul.u32 2, %s17
      %p223 = scmp.lt.s32.totalorder %s16, 1
      %s224 = scalar_select %p223, %s16, 1
      %p225 = scmp.lt.s32.totalorder %s222, 1
      %s226 = scalar_select %p225, %s222, 1
      %s227 = smul.addr %s224, 2
      %s228 = sadd.s32 %s226, %s227
      %s229 = smul.addr %s228, 4
      %s230 = scalar_lea.vmem %s1, %s229
      // Predicated region
      $region25: #{tpu_custom_call.1} parent=23 // pred_check
        %p231 = pneg %p72
      $region26: #{tpu_custom_call.1} parent=23 // pred_check_branch
        %233 = sbr.rel (%p231) target = $region28
      $region27: #{tpu_custom_call.1} parent=23 // pred_region
        %s234 = smul.u32 2, %s17
      $region28: #{tpu_custom_call.1} parent=23 // pred_fallthru
        _
    $region24: #{tpu_custom_call.1} parent=5 // pred_fallthru
      _
    %p235 = scmp.le.s32.totalorder 2, %s7
    // Predicated region
    $region29: #{tpu_custom_call.1} parent=5 // pred_check
      %p236 = pneg %p235
    $region30: #{tpu_custom_call.1} parent=5 // pred_check_branch
      %238 = sbr.rel (%p236) target = $region32
    $region31: #{tpu_custom_call.1} parent=5 // pred_region
      %s239 = ssub.s32 %s7, 2
      // Predicated region
      $region33: #{tpu_custom_call.1} parent=31 // pred_check
        %p240 = pneg %p78
      $region34: #{tpu_custom_call.1} parent=31 // pred_check_branch
        %242 = sbr.rel (%p240) target = $region36
      $region35: #{tpu_custom_call.1} parent=31 // pred_region
        %s243 = smul.u32 2, %s19
        %p244 = scmp.lt.s32.totalorder %s18, 1
        %s245 = scalar_select %p244, %s18, 1
        %p246 = scmp.lt.s32.totalorder %s243, 1
        %s247 = scalar_select %p246, %s243, 1
        %s248 = smul.addr %s245, 2
        %s249 = sadd.s32 %s247, %s248
        %s250 = smul.addr %s249, 4
        %s251 = scalar_lea.vmem %s1, %s250
      $region36: #{tpu_custom_call.1} parent=31 // pred_fallthru
        _
    $region32: #{tpu_custom_call.1} parent=5 // pred_fallthru
      _
  $region6: #{tpu_custom_call.1} parent=0 // loop_footer
    %s11 = sadd.s32 1, %s7
  $region7: #{tpu_custom_call.1} parent=0 // loop_footer_branch
    %6 = sbr.rel target = $region3
  $region8: #{tpu_custom_call.1} parent=0 // loop_exit
    _

</llo_original>
